<compile_context>
chip_gen: v7x
topology: tpu7x:2x2x1
jax: 0.10.0
libtpu: 0.0.40
codegen_flags: <defaults>
</compile_context>

<pallas_src>
import jax
import jax.numpy as jnp
from jax import lax
from jax.experimental import pallas as pl
from jax.experimental.pallas import tpu as pltpu


def _lc_cos_kernel(pred_ref, target_ref, cos_ref):
    """Per-sample cosine similarity for one (TB, D) tile: cos_i = <t_i, p_i> / (||t_i|| ||p_i||)."""
    # Upcast inside the kernel so bf16 inputs (half the HBM read traffic) still
    # accumulate the reductions in f32 (required on v5e: no bf16 VPU math).
    p = pred_ref[...].astype(jnp.float32)        # [TB, D]
    t = target_ref[...].astype(jnp.float32)      # [TB, D]

    dot = jnp.sum(t * p, axis=-1, keepdims=True)     # [TB, 1]
    p_sq = jnp.sum(p * p, axis=-1, keepdims=True)    # [TB, 1]
    t_sq = jnp.sum(t * t, axis=-1, keepdims=True)    # [TB, 1]

    # dot / (||t|| * ||p||) == dot * rsqrt(t_sq * p_sq): one EUP rsqrt + one VPU
    # mul instead of two sqrt + a divide.
    cos_ref[...] = dot * lax.rsqrt(t_sq * p_sq)


def lc_loss(pred, target, *, block_rows=1024):
    """Pallas-backed LcLoss forward. pred, target: [B, D] (f32 or bf16) -> scalar f32."""
    assert pred.shape == target.shape and pred.ndim == 2
    B, D = pred.shape

    # Tile size over the batch: multiple of 8 sublanes, capped so the pipeline's
    # resident VMEM (2 inputs x 2 buffers x TB*D*4B) stays far under the scoped
    # limit on every generation (v5e/v6e 128 MiB, v7x 64 MiB physical).
    b8 = ((B + 7) // 8) * 8
    tb = min(block_rows, b8)
    num_tiles = pl.cdiv(B, tb)
    b_pad = num_tiles * tb

    if b_pad != B:
        # Pad with ones so padded rows stay finite; they are sliced off below.
        pad = ((0, b_pad - B), (0, 0))
        pred = jnp.pad(pred, pad, constant_values=1.0)
        target = jnp.pad(target, pad, constant_values=1.0)

    bytes_per_elem = jnp.dtype(pred.dtype).itemsize
    cost = pl.CostEstimate(
        flops=6 * b_pad * D,                 # 3 elementwise muls + 3 row reductions
        transcendentals=b_pad,               # one rsqrt per row
        bytes_accessed=2 * b_pad * D * bytes_per_elem + 4 * b_pad,
    )

    cos = pl.pallas_call(
        _lc_cos_kernel,
        out_shape=jax.ShapeDtypeStruct((b_pad, 1), jnp.float32),
        grid=(num_tiles,),
        in_specs=[
            pl.BlockSpec((tb, D), lambda i: (i, 0)),
            pl.BlockSpec((tb, D), lambda i: (i, 0)),
        ],
        out_specs=pl.BlockSpec((tb, 1), lambda i: (i, 0)),
        compiler_params=pltpu.CompilerParams(
            # Tiles are independent -> shard across both TensorCores on v7x.
            dimension_semantics=("parallel",),
        ),
        cost_estimate=cost,
    )(pred, target)

    cos = cos[:B, 0]
    # Rounding can push |cos| slightly above 1 and make arccos NaN; clamp.
    cos = jnp.clip(cos, -1.0, 1.0)
    # TODO(synk): arccos has no reliable Mosaic/TPU EUP lowering; applied here in
    # plain JAX on the tiny [B] per-sample cosine vector (exact torch semantics).
    return jnp.sum(jnp.arccos(cos))


def lc_loss_ref(pred, target):
    """Pure-JAX reference mirroring the PyTorch module."""
    dot = jnp.sum(target * pred, axis=-1)
    cos = dot / (jnp.linalg.norm(target, axis=-1) * jnp.linalg.norm(pred, axis=-1))
    return jnp.sum(jnp.arccos(cos))


if __name__ == "__main__":
    key = jax.random.PRNGKey(0)
    k1, k2, k3, k4 = jax.random.split(key, 4)

    # Small shapes consistent with the module's [batch, feature] row-vector inputs.
    B, D = 8, 128
    pred = jax.random.normal(k1, (B, D), dtype=jnp.float32)
    target = jax.random.normal(k2, (B, D), dtype=jnp.float32)

    out = jax.block_until_ready(lc_loss(pred, target))
    ref = jax.block_until_ready(lc_loss_ref(pred, target))
    assert jnp.isfinite(out), "kernel produced non-finite loss"
    assert jnp.allclose(out, ref, rtol=1e-5, atol=1e-5), (out, ref)

    # Exercise the padded path (B not a multiple of 8).
    B2, D2 = 20, 128
    pred2 = jax.random.normal(k3, (B2, D2), dtype=jnp.float32)
    target2 = jax.random.normal(k4, (B2, D2), dtype=jnp.float32)
    out2 = jax.block_until_ready(lc_loss(pred2, target2))
    ref2 = jax.block_until_ready(lc_loss_ref(pred2, target2))
    assert jnp.isfinite(out2), "kernel produced non-finite loss (padded case)"
    assert jnp.allclose(out2, ref2, rtol=1e-5, atol=1e-5), (out2, ref2)

    print("KERNEL_OK")
</pallas_src>

<mosaic_0001>
module attributes {stable_mosaic.version = 11 : i64} {
  func.func @_lc_cos_kernel(%arg0: i32, %arg1: memref<8x128xf32, #tpu.memory_space<vmem>>, %arg2: memref<8x128xf32, #tpu.memory_space<vmem>>, %arg3: memref<8x1xf32, #tpu.memory_space<vmem>>) attributes {dimension_semantics = [#tpu.dimension_semantics<parallel>], iteration_bounds = array<i64: 1>, scalar_prefetch = 0 : i64, scratch_operands = 0 : i64, tpu.core_type = #tpu.core_type<tc>, window_params = [{transform_indices = @transform_0, window_bounds = array<i64: 8, 128>}, {transform_indices = @transform_1, window_bounds = array<i64: 8, 128>}, {transform_indices = @transform_2, window_bounds = array<i64: 8, 1>}]} {
    %c0 = arith.constant 0 : index
    %c0_0 = arith.constant 0 : index
    %0 = vector.load %arg1[%c0, %c0_0] : memref<8x128xf32, #tpu.memory_space<vmem>>, vector<8x128xf32>
    %c0_1 = arith.constant 0 : index
    %c0_2 = arith.constant 0 : index
    %1 = vector.load %arg2[%c0_1, %c0_2] : memref<8x128xf32, #tpu.memory_space<vmem>>, vector<8x128xf32>
    %2 = arith.mulf %1, %0 : vector<8x128xf32>
    %cst = arith.constant dense<0.000000e+00> : vector<8xf32>
    %3 = vector.multi_reduction <add>, %2, %cst [1] : vector<8x128xf32> to vector<8xf32>
    %4 = vector.shape_cast %3 : vector<8xf32> to vector<8x1xf32>
    %5 = arith.mulf %0, %0 : vector<8x128xf32>
    %cst_3 = arith.constant dense<0.000000e+00> : vector<8xf32>
    %6 = vector.multi_reduction <add>, %5, %cst_3 [1] : vector<8x128xf32> to vector<8xf32>
    %7 = vector.shape_cast %6 : vector<8xf32> to vector<8x1xf32>
    %8 = arith.mulf %1, %1 : vector<8x128xf32>
    %cst_4 = arith.constant dense<0.000000e+00> : vector<8xf32>
    %9 = vector.multi_reduction <add>, %8, %cst_4 [1] : vector<8x128xf32> to vector<8xf32>
    %10 = vector.shape_cast %9 : vector<8xf32> to vector<8x1xf32>
    %11 = arith.mulf %10, %7 : vector<8x1xf32>
    %12 = math.rsqrt %11 : vector<8x1xf32>
    %13 = arith.mulf %4, %12 : vector<8x1xf32>
    %c0_5 = arith.constant 0 : index
    %c0_6 = arith.constant 0 : index
    %14 = vector.load %arg3[%c0_5, %c0_6] : memref<8x1xf32, #tpu.memory_space<vmem>>, vector<8x1xf32>
    tpu.vector_store %arg3[%c0_5, %c0_6], %13 {strides = array<i32>} : memref<8x1xf32, #tpu.memory_space<vmem>>, vector<8x1xf32>,
    return
  }
  func.func @transform_0(%arg0: i32) -> (i32, i32) {
    %c0_i32 = arith.constant 0 : i32
    %c0_i32_0 = arith.constant 0 : i32
    return %arg0, %c0_i32 : i32, i32
  }
  func.func @transform_1(%arg0: i32) -> (i32, i32) {
    %c0_i32 = arith.constant 0 : i32
    %c0_i32_0 = arith.constant 0 : i32
    return %arg0, %c0_i32 : i32, i32
  }
  func.func @transform_2(%arg0: i32) -> (i32, i32) {
    %c0_i32 = arith.constant 0 : i32
    %c0_i32_0 = arith.constant 0 : i32
    return %arg0, %c0_i32 : i32, i32
  }
}

</mosaic_0001>

<llo_original>
// kernel: tpu_custom_call.1
$region0: #{tpu_custom_call.1}
  #allocation0 [shape = 'u32[]', space=smem, size = 0x4, offset = 0x4, fixed_abs, tag = 'smem constant byte address 0x4 - core index']
  #allocation1 [shape = 'u32[144,128]{1,0:T(1,128)}', space=vmem, size = 0x12000, scoped, tag = 'internal scratch']
  %s0 = inlined_call_operand.hbm [shape: f32[8,128], index: 0, kind: input, shape index: {}]
  %s1 = inlined_call_operand.hbm [shape: f32[8,128], index: 1, kind: input, shape index: {}]
  %s2 = inlined_call_operand.vmem [shape: f32[8,1], index: 2, kind: output, shape index: {}]
  %s3 = sld [smem:[#allocation0]]
  $region26: #{tpu_custom_call.1} parent=0
    _
  %s5 = ssub.s32 1, %s3
  %s6 = scalar_select 0, %s5, %s3
  $region1: #{tpu_custom_call.1} parent=0
    #allocation2 [shape = 'u8[4096]{0}', space=vmem, size = 0x1000, scoped, tag = 'input window, operand 0, single buffered']
    #allocation3 [shape = 's32[1]{0}', space=sflag, size = 0x4, scoped, tag = 'scoped memory for tpu_custom_call.1']
    #allocation4 [shape = 'u8[4096]{0}', space=vmem, size = 0x1000, scoped, tag = 'input window, operand 1, single buffered']
    #allocation5 [shape = 's32[1]{0}', space=sflag, size = 0x4, scoped, tag = 'scoped memory for tpu_custom_call.1']
    %7 = vsyncpa [#allocation3], 0
    %8 = vsyncpa [#allocation5], 0
    // Predicated region
    $region2: #{tpu_custom_call.1} parent=1 // pred_check
      _
    $region3: #{tpu_custom_call.1} parent=1 // pred_check_branch
      %10 = sbr.rel (0) target = $region5
    $region4: #{tpu_custom_call.1} parent=1 // pred_region
      %s12 = ssub.s32 128, 128
      %13 = vsyncadd [#allocation3], %s12
      %s15 = sshll.u32 [#allocation2], 4
      %s16 = int_to_ptr.vmem [resolvable:$true] %s15
      %18 = dma.hbm_to_vmem [thread:$0]  %s0, 128, %s16, [#allocation3]
    $region5: #{tpu_custom_call.1} parent=1 // pred_fallthru
      _
    // Predicated region
    $region6: #{tpu_custom_call.1} parent=1 // pred_check
      _
    $region7: #{tpu_custom_call.1} parent=1 // pred_check_branch
      %20 = sbr.rel (0) target = $region9
    $region8: #{tpu_custom_call.1} parent=1 // pred_region
      %s22 = ssub.s32 128, 128
      %23 = vsyncadd [#allocation5], %s22
      %s25 = sshll.u32 [#allocation4], 4
      %s26 = int_to_ptr.vmem [resolvable:$true] %s25
      %28 = dma.hbm_to_vmem [thread:$0]  %s1, 128, %s26, [#allocation5]
    $region9: #{tpu_custom_call.1} parent=1 // pred_fallthru
      _
    // Predicated region
    $region10: #{tpu_custom_call.1} parent=1 // pred_check
      _
    $region11: #{tpu_custom_call.1} parent=1 // pred_check_branch
      %30 = sbr.rel (0) target = $region13
    $region12: #{tpu_custom_call.1} parent=1 // pred_region
      %31 = dma.done [#allocation3], 128
    $region13: #{tpu_custom_call.1} parent=1 // pred_fallthru
      _
    // Predicated region
    $region14: #{tpu_custom_call.1} parent=1 // pred_check
      _
    $region15: #{tpu_custom_call.1} parent=1 // pred_check_branch
      %33 = sbr.rel (0) target = $region17
    $region16: #{tpu_custom_call.1} parent=1 // pred_region
      %34 = dma.done [#allocation5], 128
    $region17: #{tpu_custom_call.1} parent=1 // pred_fallthru
      _
    %v35 = vld [vmem:[#allocation2] sm:$0xff]
    %v36 = vld [vmem:[#allocation4] sm:$0xff]
    %v37 = vmul.f32 %v36, %v35
    %38 = vadd.xlane.f32.xlu0 %v37
    %v39 = vpop.xlane.xlu0 %38
    %v40 = vmul.f32 %v35, %v35
    %41 = vadd.xlane.f32.xlu0 %v40
    %v42 = vpop.xlane.xlu0 %41
    %v43 = vmul.f32 %v36, %v36
    %44 = vadd.xlane.f32.xlu0 %v43
    %v45 = vpop.xlane.xlu0 %44
    %v46 = vmul.f32 %v45, %v42
    %v47 = vrsqrt.pop %v46
    %v48 = vmul.f32 %v39, %v47
    %vm49 = vcmask 7168
    %50 = vst.msk [vmem:[%s2] sm:$0xff] %vm49, %v48
    // Predicated region
    $region18: #{tpu_custom_call.1} parent=1 // pred_check
      _
    $region19: #{tpu_custom_call.1} parent=1 // pred_check_branch
      %52 = sbr.rel (0) target = $region21
    $region20: #{tpu_custom_call.1} parent=1 // pred_region
      _
    $region21: #{tpu_custom_call.1} parent=1 // pred_fallthru
      _
    // Predicated region
    $region22: #{tpu_custom_call.1} parent=1 // pred_check
      _
    $region23: #{tpu_custom_call.1} parent=1 // pred_check_branch
      %54 = sbr.rel (0) target = $region25
    $region24: #{tpu_custom_call.1} parent=1 // pred_region
      _
    $region25: #{tpu_custom_call.1} parent=1 // pred_fallthru
      _
    %55 = vsyncpa [#allocation3], 1
    %56 = vsyncpa [#allocation5], 1

</llo_original>
